<compile_context>
chip_gen: v7x
topology: tpu7x:2x2x1
jax: 0.10.0
libtpu: 0.0.40
codegen_flags: <defaults>
</compile_context>

<pallas_src>
import functools
import math
import numpy as np
import jax
import jax.numpy as jnp
from jax.experimental import pallas as pl
from jax.experimental.pallas import tpu as pltpu

PATCH = 4            # synthetic DINOv2 patch size
HIDDEN = 32          # synthetic DINOv2 hidden size (real: 768)
ADAPTER_DIM = 256    # feature_adapter output dim (matches the PyTorch module)
SCALES = (1, 2, 4, 8)


def _round_up(x, m):
    return ((x + m - 1) // m) * m


def _imgs_per_step(BT, max_imgs=8):
    """Largest divisor of BT that is <= max_imgs, preferring >= 2 grid steps
    (so both TensorCores on v7x get work via 'parallel' semantics)."""
    divisors = [d for d in range(1, min(BT, max_imgs) + 1) if BT % d == 0]
    two_step = [d for d in divisors if BT // d >= 2]
    return max(two_step) if two_step else max(divisors)


# ----------------------------- Pallas kernel ------------------------------

def _encoder_kernel(x_ref, pool_ref, w_ref, b_ref, o_ref, *, imgs, no_pad):
    """One grid step = IMGS images.

    x_ref    : (IMGS, Np, Kp)        bf16  zero-padded patch pixels
    pool_ref : (No_pad, Np)          bf16  block-averaging matrix (all scales)
    w_ref    : (Kp, 256)             bf16  fused patch-embed @ adapter weight
    b_ref    : (No_pad, 256)         f32   pooled bias (pos-embed + level_embed)
    o_ref    : (IMGS, No_pad, 256)   f32
    """
    pool = pool_ref[...]
    w = w_ref[...]
    b = b_ref[...]
    # multi-scale avg-pool of the raw (padded) patch pixels, stacked over IMGS
    pooled = jnp.concatenate(
        [jnp.dot(pool, x_ref[i], preferred_element_type=jnp.float32)
         for i in range(imgs)], axis=0)                      # (IMGS*No_pad, Kp) f32
    # one big lane-dense channel matmul: M = IMGS*No_pad, K = Kp, N = 256
    out = jnp.dot(pooled.astype(jnp.bfloat16), w,
                  preferred_element_type=jnp.float32)        # (IMGS*No_pad, 256) f32
    for i in range(imgs):
        o_ref[i] = (out[i * no_pad:(i + 1) * no_pad, :] + b).astype(o_ref.dtype)


# ----------------------------- glue / params ------------------------------

def build_pool_matrix(Hp, Wp, scales):
    """Row-stacked averaging matrix mapping the Hp*Wp patch grid to all pooled
    levels.  Built once on the host via Kronecker products."""
    blocks, starts, counts, start = [], [], [], 0
    for s in scales:
        Ho, Wo = Hp // s, Wp // s
        starts.append(start)
        counts.append(Ho * Wo)
        start += Ho * Wo
        ph = np.kron(np.eye(Ho, dtype=np.float32), np.full((1, s), 1.0 / s, np.float32))
        pw = np.kron(np.eye(Wo, dtype=np.float32), np.full((1, s), 1.0 / s, np.float32))
        blocks.append(np.kron(ph, pw))          # [Ho*Wo, Hp*Wp], weights = 1/s^2
    return np.concatenate(blocks, axis=0), starts, counts


def init_params(key, C, H, W):
    Hp, Wp = H // PATCH, W // PATCH
    Np = Hp * Wp
    pdim = C * PATCH * PATCH
    ks = jax.random.split(key, 6)
    return {
        # synthetic DINOv2 stub (Conv2d patch-embed as matmul, CLS, pos-embed)
        "w_pe": 0.02 * jax.random.normal(ks[0], (pdim, HIDDEN), jnp.float32),
        "b_pe": jnp.zeros((HIDDEN,), jnp.float32),
        "cls_token": 0.02 * jax.random.normal(ks[1], (1, 1, HIDDEN), jnp.float32),
        "pos_embed": 0.02 * jax.random.normal(ks[2], (1, 1 + Np, HIDDEN), jnp.float32),
        # feature_adapter = nn.Linear(hidden, 256)
        "w_fa": (1.0 / math.sqrt(HIDDEN)) *
                jax.random.normal(ks[3], (HIDDEN, ADAPTER_DIM), jnp.float32),
        "b_fa": jnp.zeros((ADAPTER_DIM,), jnp.float32),
        # level_embed = nn.Parameter(Tensor(4, 256)); nn.init.normal_
        "level_embed": jax.random.normal(ks[4], (len(SCALES), ADAPTER_DIM), jnp.float32),
    }


def build_encoder_consts(params, C, H, W):
    """Precompute (once, OUTSIDE the forward) everything the kernel needs."""
    Hp, Wp = H // PATCH, W // PATCH
    Np = Hp * Wp
    pdim = C * PATCH * PATCH
    Kp = _round_up(pdim, 128)                    # pad contraction dim to 128

    # Fuse the two Linears (exact for the linear stub): W_fused = w_pe @ w_fa.
    w_fused = params["w_pe"] @ params["w_fa"]                       # [pdim, 256]
    w_fused = jnp.pad(w_fused, ((0, Kp - pdim), (0, 0))).astype(jnp.bfloat16)

    # Per-token bias (pos-embed folded in), then pooled on the host and the
    # level_embed rows folded in -> ONE resident (No_pad, 256) f32 constant.
    bias_tok = ((params["b_pe"][None, :] + params["pos_embed"][0, 1:, :])
                @ params["w_fa"] + params["b_fa"][None, :])          # [Np, 256]

    pool_np, starts, counts = build_pool_matrix(Hp, Wp, SCALES)
    No = pool_np.shape[0]                        # 85 for an 8x8 patch grid
    No_pad = _round_up(No, 8)                    # 88 -> no sublane masking
    level_rows = jnp.concatenate(
        [jnp.broadcast_to(params["level_embed"][i][None, :], (counts[i], ADAPTER_DIM))
         for i in range(len(SCALES))], axis=0)                       # [No, 256]
    bias_pooled = jnp.asarray(pool_np) @ bias_tok + level_rows       # [No, 256]
    bias_pooled = jnp.pad(bias_pooled, ((0, No_pad - No), (0, 0))).astype(jnp.float32)

    pool_pad = np.zeros((No_pad, Np), np.float32)
    pool_pad[:No] = pool_np
    pool_mat = jnp.asarray(pool_pad).astype(jnp.bfloat16)   # 1/s^2 exact in bf16

    return {
        "Kp": Kp, "No": No, "No_pad": No_pad, "Np": Np, "pdim": pdim,
        "w_fused": w_fused, "bias_pooled": bias_pooled, "pool_mat": pool_mat,
        "spatial_shapes": jnp.asarray([[Hp // s, Wp // s] for s in SCALES], jnp.int32),
        "level_start_index": jnp.asarray(starts, jnp.int32),
    }


def dinov2_visual_encoder_forward(images, consts):
    """Mirrors DINOv2VisualEncoder.forward.

    images: [B, T=2, C, H, W]  (NCHW per time step, like PyTorch)
    returns (Vfeatures_list, spatial_shapes, level_start_index, valid_ratios)
    """
    B, T, C, H, W = images.shape
    assert T == 2, "Expected 2 time steps for temporal processing"
    Hp, Wp = H // PATCH, W // PATCH
    Np = Hp * Wp
    BT = B * T
    pdim = C * PATCH * PATCH
    Kp = consts["Kp"]
    No, No_pad = consts["No"], consts["No_pad"]

    imgs = _imgs_per_step(BT)
    steps = BT // imgs

    # glue: bf16 FIRST (halves transpose bytes), fold T into batch,
    # patchify NCHW -> [BT, Np, pdim], pad K once in bf16 (fuses under jit).
    x = images.astype(jnp.bfloat16).reshape(BT, C, H, W)
    patches = (x.reshape(BT, C, Hp, PATCH, Wp, PATCH)
                 .transpose(0, 2, 4, 1, 3, 5)          # per-patch order (c, i, j)
                 .reshape(BT, Np, pdim))
    patches = jnp.pad(patches, ((0, 0), (0, 0), (0, Kp - pdim)))

    kernel = functools.partial(_encoder_kernel, imgs=imgs, no_pad=No_pad)
    out = pl.pallas_call(
        kernel,
        out_shape=jax.ShapeDtypeStruct((BT, No_pad, ADAPTER_DIM), jnp.float32),
        grid=(steps,),
        in_specs=[
            pl.BlockSpec((imgs, Np, Kp), lambda i: (i, 0, 0)),      # patches (M-tiled)
            pl.BlockSpec((No_pad, Np), lambda i: (0, 0)),           # pool_mat (resident)
            pl.BlockSpec((Kp, ADAPTER_DIM), lambda i: (0, 0)),      # W_fused (resident)
            pl.BlockSpec((No_pad, ADAPTER_DIM), lambda i: (0, 0)),  # bias_pooled (resident)
        ],
        out_specs=pl.BlockSpec((imgs, No_pad, ADAPTER_DIM), lambda i: (i, 0, 0)),
        compiler_params=pltpu.CompilerParams(
            dimension_semantics=("parallel",)),
    )(patches, consts["pool_mat"], consts["w_fused"], consts["bias_pooled"])

    V = out[:, :No, :].reshape(B, T, No, ADAPTER_DIM)
    Vfeatures_list = [V[:, t] for t in range(T)]

    valid_ratios = jnp.ones((B, len(SCALES), 2), jnp.float32)
    return (Vfeatures_list, consts["spatial_shapes"],
            consts["level_start_index"], valid_ratios)


# pure-JAX f32 reference of one timestep (for a correctness sanity check)
def _ref_timestep(x, params):
    B, C, H, W = x.shape
    Hp, Wp = H // PATCH, W // PATCH
    patches = (x.reshape(B, C, Hp, PATCH, Wp, PATCH)
                 .transpose(0, 2, 4, 1, 3, 5)
                 .reshape(B, Hp * Wp, C * PATCH * PATCH))
    tok = patches @ params["w_pe"] + params["b_pe"]
    hidden = jnp.concatenate(
        [jnp.broadcast_to(params["cls_token"], (B, 1, HIDDEN)), tok], axis=1) + params["pos_embed"]
    base = hidden[:, 1:, :]
    feat = base @ params["w_fa"] + params["b_fa"]
    spatial = feat.reshape(B, Hp, Wp, ADAPTER_DIM)
    outs = []
    for i, s in enumerate(SCALES):
        pooled = spatial.reshape(B, Hp // s, s, Wp // s, s, ADAPTER_DIM).mean(axis=(2, 4))
        outs.append(pooled.reshape(B, -1, ADAPTER_DIM)
                    + params["level_embed"][i][None, None, :])
    return jnp.concatenate(outs, axis=1)


if __name__ == "__main__":
    B, T, C, H, W = 2, 2, 3, 32, 32            # small shapes; patch grid 8x8
    key = jax.random.PRNGKey(0)
    k_img, k_par = jax.random.split(key)
    images = jax.random.normal(k_img, (B, T, C, H, W), jnp.float32)
    params = init_params(k_par, C, H, W)
    consts = build_encoder_consts(params, C, H, W)   # hoisted out of the forward

    fwd = jax.jit(lambda im: dinov2_visual_encoder_forward(im, consts))
    out = fwd(images)
    (Vlist, spatial_shapes, level_start_index, valid_ratios) = jax.block_until_ready(out)

    total_tokens = sum((H // PATCH // s) * (W // PATCH // s) for s in SCALES)  # 64+16+4+1
    assert len(Vlist) == T
    assert Vlist[0].shape == (B, total_tokens, ADAPTER_DIM)
    assert spatial_shapes.shape == (len(SCALES), 2)
    assert level_start_index.shape == (len(SCALES),)
    assert valid_ratios.shape == (B, len(SCALES), 2)

    # bf16 MXU inputs (f32 accumulation) + fused/reassociated rounding order -> 5e-3
    for t in range(T):
        ref = _ref_timestep(images[:, t], params)
        np.testing.assert_allclose(np.asarray(Vlist[t]), np.asarray(ref),
                                   rtol=5e-3, atol=5e-3)

    print("KERNEL_OK")
</pallas_src>

<mosaic_0001>
module attributes {stable_mosaic.version = 11 : i64} {
  func.func @_encoder_kernel(%arg0: i32, %arg1: memref<2x64x128xbf16, #tpu.memory_space<vmem>>, %arg2: memref<88x64xbf16, #tpu.memory_space<vmem>>, %arg3: memref<128x256xbf16, #tpu.memory_space<vmem>>, %arg4: memref<88x256xf32, #tpu.memory_space<vmem>>, %arg5: memref<2x88x256xf32, #tpu.memory_space<vmem>>) attributes {dimension_semantics = [#tpu.dimension_semantics<parallel>], iteration_bounds = array<i64: 2>, scalar_prefetch = 0 : i64, scratch_operands = 0 : i64, tpu.core_type = #tpu.core_type<tc>, window_params = [{transform_indices = @transform_0, window_bounds = array<i64: 2, 64, 128>}, {pipeline_mode = #tpu.pipeline_mode<synchronous>, transform_indices = @transform_1, window_bounds = array<i64: 88, 64>}, {pipeline_mode = #tpu.pipeline_mode<synchronous>, transform_indices = @transform_2, window_bounds = array<i64: 128, 256>}, {pipeline_mode = #tpu.pipeline_mode<synchronous>, transform_indices = @transform_3, window_bounds = array<i64: 88, 256>}, {transform_indices = @transform_4, window_bounds = array<i64: 2, 88, 256>}]} {
    %c0 = arith.constant 0 : index
    %c0_0 = arith.constant 0 : index
    %0 = vector.load %arg2[%c0, %c0_0] : memref<88x64xbf16, #tpu.memory_space<vmem>>, vector<88x64xbf16>
    %c0_1 = arith.constant 0 : index
    %c0_2 = arith.constant 0 : index
    %1 = vector.load %arg3[%c0_1, %c0_2] : memref<128x256xbf16, #tpu.memory_space<vmem>>, vector<128x256xbf16>
    %c0_3 = arith.constant 0 : index
    %c0_4 = arith.constant 0 : index
    %2 = vector.load %arg4[%c0_3, %c0_4] : memref<88x256xf32, #tpu.memory_space<vmem>>, vector<88x256xf32>
    %c0_5 = arith.constant 0 : index
    %c0_6 = arith.constant 0 : index
    %c0_7 = arith.constant 0 : index
    %3 = vector.load %arg1[%c0_5, %c0_6, %c0_7] : memref<2x64x128xbf16, #tpu.memory_space<vmem>>, vector<1x64x128xbf16>
    %4 = vector.shape_cast %3 : vector<1x64x128xbf16> to vector<64x128xbf16>
    %cst = arith.constant dense<0.000000e+00> : vector<88x128xf32>
    %5 = tpu.matmul %0, %4, %cst {dimension_numbers = #tpu.dot_dimension_numbers<[1], [0], [0], [1], [0, 0, 1, 1], [], []>} : vector<88x64xbf16>, vector<64x128xbf16>, vector<88x128xf32> -> vector<88x128xf32>
    %c1 = arith.constant 1 : index
    %c0_8 = arith.constant 0 : index
    %c0_9 = arith.constant 0 : index
    %6 = vector.load %arg1[%c1, %c0_8, %c0_9] : memref<2x64x128xbf16, #tpu.memory_space<vmem>>, vector<1x64x128xbf16>
    %7 = vector.shape_cast %6 : vector<1x64x128xbf16> to vector<64x128xbf16>
    %cst_10 = arith.constant dense<0.000000e+00> : vector<88x128xf32>
    %8 = tpu.matmul %0, %7, %cst_10 {dimension_numbers = #tpu.dot_dimension_numbers<[1], [0], [0], [1], [0, 0, 1, 1], [], []>} : vector<88x64xbf16>, vector<64x128xbf16>, vector<88x128xf32> -> vector<88x128xf32>
    %9 = tpu.concatenate %5, %8 in 0 : vector<88x128xf32>, vector<88x128xf32> -> vector<176x128xf32>
    %10 = arith.truncf %9 : vector<176x128xf32> to vector<176x128xbf16>
    %cst_11 = arith.constant dense<0.000000e+00> : vector<176x256xf32>
    %11 = tpu.matmul %10, %1, %cst_11 {dimension_numbers = #tpu.dot_dimension_numbers<[1], [0], [0], [1], [0, 0, 1, 1], [], []>} : vector<176x128xbf16>, vector<128x256xbf16>, vector<176x256xf32> -> vector<176x256xf32>
    %12 = vector.extract_strided_slice %11 {offsets = [0, 0], sizes = [88, 256], strides = [1, 1]} : vector<176x256xf32> to vector<88x256xf32>
    %13 = arith.addf %12, %2 : vector<88x256xf32>
    %c0_12 = arith.constant 0 : index
    %c0_13 = arith.constant 0 : index
    %c0_14 = arith.constant 0 : index
    %14 = vector.load %arg5[%c0_12, %c0_13, %c0_14] : memref<2x88x256xf32, #tpu.memory_space<vmem>>, vector<1x88x256xf32>
    %15 = vector.shape_cast %14 : vector<1x88x256xf32> to vector<88x256xf32>
    %16 = vector.shape_cast %13 : vector<88x256xf32> to vector<1x88x256xf32>
    tpu.vector_store %arg5[%c0_12, %c0_13, %c0_14], %16 {strides = array<i32>} : memref<2x88x256xf32, #tpu.memory_space<vmem>>, vector<1x88x256xf32>,
    %17 = vector.extract_strided_slice %11 {offsets = [88, 0], sizes = [88, 256], strides = [1, 1]} : vector<176x256xf32> to vector<88x256xf32>
    %18 = arith.addf %17, %2 : vector<88x256xf32>
    %c1_15 = arith.constant 1 : index
    %c0_16 = arith.constant 0 : index
    %c0_17 = arith.constant 0 : index
    %19 = vector.load %arg5[%c1_15, %c0_16, %c0_17] : memref<2x88x256xf32, #tpu.memory_space<vmem>>, vector<1x88x256xf32>
    %20 = vector.shape_cast %19 : vector<1x88x256xf32> to vector<88x256xf32>
    %21 = vector.shape_cast %18 : vector<88x256xf32> to vector<1x88x256xf32>
    tpu.vector_store %arg5[%c1_15, %c0_16, %c0_17], %21 {strides = array<i32>} : memref<2x88x256xf32, #tpu.memory_space<vmem>>, vector<1x88x256xf32>,
    return
  }
  func.func @transform_0(%arg0: i32) -> (i32, i32, i32) {
    %c0_i32 = arith.constant 0 : i32
    %c0_i32_0 = arith.constant 0 : i32
    %c0_i32_1 = arith.constant 0 : i32
    return %arg0, %c0_i32, %c0_i32_0 : i32, i32, i32
  }
  func.func @transform_1(%arg0: i32) -> (i32, i32) {
    %c0_i32 = arith.constant 0 : i32
    %c0_i32_0 = arith.constant 0 : i32
    %c0_i32_1 = arith.constant 0 : i32
    return %c0_i32, %c0_i32_0 : i32, i32
  }
  func.func @transform_2(%arg0: i32) -> (i32, i32) {
    %c0_i32 = arith.constant 0 : i32
    %c0_i32_0 = arith.constant 0 : i32
    %c0_i32_1 = arith.constant 0 : i32
    return %c0_i32, %c0_i32_0 : i32, i32
  }
  func.func @transform_3(%arg0: i32) -> (i32, i32) {
    %c0_i32 = arith.constant 0 : i32
    %c0_i32_0 = arith.constant 0 : i32
    %c0_i32_1 = arith.constant 0 : i32
    return %c0_i32, %c0_i32_0 : i32, i32
  }
  func.func @transform_4(%arg0: i32) -> (i32, i32, i32) {
    %c0_i32 = arith.constant 0 : i32
    %c0_i32_0 = arith.constant 0 : i32
    %c0_i32_1 = arith.constant 0 : i32
    return %arg0, %c0_i32, %c0_i32_0 : i32, i32, i32
  }
}

</mosaic_0001>

<llo_original>
// kernel: _lambda_.1
$region0: #{_lambda_.1}
  #allocation0 [shape = 'u32[]', space=smem, size = 0x4, offset = 0x4, fixed_abs, tag = 'smem constant byte address 0x4 - core index']
  #allocation1 [shape = 'u32[144,128]{1,0:T(1,128)}', space=vmem, size = 0x12000, scoped, tag = 'internal scratch']
  %s0 = inlined_call_operand.vmem [shape: bf16[4,64,128], index: 0, kind: input, shape index: {}]
  %s1 = inlined_call_operand.vmem [shape: bf16[88,64], index: 1, kind: input, shape index: {}]
  %s2 = inlined_call_operand.vmem [shape: bf16[128,256], index: 2, kind: input, shape index: {}]
  %s3 = inlined_call_operand.vmem [shape: f32[88,256], index: 3, kind: input, shape index: {}]
  %s4 = inlined_call_operand.vmem [shape: f32[4,88,256], index: 4, kind: output, shape index: {}]
  %s5 = sld [smem:[#allocation0]]
  $region49: #{_lambda_.1} parent=0
    _
  %s7 = ssub.s32 1, %s5
  %s8 = scalar_select 0, %s7, %s5
  loop: start=0, step=1, limit=4
  $region2: #{_lambda_.1} parent=0 // loop_pre_header
    _
  $region3: #{_lambda_.1} parent=0 // loop_header
    %s10 = sphi 0, %s14
    %p11 = scmp.ge.s32.totalorder %s10, 4
    %s20 = sphi 0, %s22
    %s23 = sphi 0, %s20
    %s24 = sphi 0, %s23
    %s40 = sphi 0, %s24
    %s44 = sphi 0, %s44
    %s46 = sphi 0, %s44
    %s47 = sphi 0, %s46
    %s61 = sphi 0, %s47
    %s65 = sphi 0, %s65
    %s67 = sphi 0, %s65
    %s68 = sphi 0, %s67
    %s82 = sphi 0, %s68
    %s86 = sphi 0, %s86
    %s88 = sphi 0, %s86
    %s89 = sphi 0, %s88
    %s103 = sphi 0, %s89
    %s109 = sphi 0, %s111
    %s112 = sphi 0, %s109
    %s113 = sphi 0, %s112
    %s129 = sphi 0, %s113
  $region4: #{_lambda_.1} parent=0 // loop_header_branch
    %13 = sbr.rel (%p11) target = $region8
  $region5: #{_lambda_.1} parent=0 // loop_body
    %s15 = ssub.s32 %s10, 1
    %s16 = ssub.s32 %s10, 2
    %s17 = sadd.s32 %s10, 1
    %s18 = ssub.s32 %s10, %s17
    %p19 = scmp.eq.s32.totalorder %s18, 0
    %s21 = sadd.s32 %s20, 1
    %s22 = scalar_select %p19, %s20, %s21
    %p25 = pneg %p19
    %p26 = scmp.eq.s32.totalorder %s10, 1
    %p27 = por %p25, %p26
    %p28 = scmp.ne.s32.totalorder %s20, %s23
    %p29 = scmp.eq.s32.totalorder %s10, 0
    %p30 = por %p28, %p29
    %p31 = scmp.ne.s32.totalorder %s20, %s23
    %p32 = scmp.eq.s32.totalorder %s15, 1
    %p33 = por %p31, %p32
    %p34 = scmp.ne.s32.totalorder %s23, %s24
    %p35 = scmp.eq.s32.totalorder %s15, 0
    %p36 = por %p34, %p35
    %p37 = scmp.ne.s32.totalorder %s23, %s24
    %p38 = scmp.eq.s32.totalorder %s16, 1
    %p39 = por %p37, %p38
    %p41 = scmp.ne.s32.totalorder %s24, %s40
    %p42 = scmp.eq.s32.totalorder %s16, 0
    %p43 = por %p41, %p42
    %s45 = sadd.s32 %s44, 1
    %p48 = scmp.eq.s32.totalorder %s10, 1
    %p49 = scmp.ne.s32.totalorder %s44, %s46
    %p50 = scmp.eq.s32.totalorder %s10, 0
    %p51 = por %p49, %p50
    %p52 = scmp.ne.s32.totalorder %s44, %s46
    %p53 = scmp.eq.s32.totalorder %s15, 1
    %p54 = por %p52, %p53
    %p55 = scmp.ne.s32.totalorder %s46, %s47
    %p56 = scmp.eq.s32.totalorder %s15, 0
    %p57 = por %p55, %p56
    %p58 = scmp.ne.s32.totalorder %s46, %s47
    %p59 = scmp.eq.s32.totalorder %s16, 1
    %p60 = por %p58, %p59
    %p62 = scmp.ne.s32.totalorder %s47, %s61
    %p63 = scmp.eq.s32.totalorder %s16, 0
    %p64 = por %p62, %p63
    %s66 = sadd.s32 %s65, 1
    %p69 = scmp.eq.s32.totalorder %s10, 1
    %p70 = scmp.ne.s32.totalorder %s65, %s67
    %p71 = scmp.eq.s32.totalorder %s10, 0
    %p72 = por %p70, %p71
    %p73 = scmp.ne.s32.totalorder %s65, %s67
    %p74 = scmp.eq.s32.totalorder %s15, 1
    %p75 = por %p73, %p74
    %p76 = scmp.ne.s32.totalorder %s67, %s68
    %p77 = scmp.eq.s32.totalorder %s15, 0
    %p78 = por %p76, %p77
    %p79 = scmp.ne.s32.totalorder %s67, %s68
    %p80 = scmp.eq.s32.totalorder %s16, 1
    %p81 = por %p79, %p80
    %p83 = scmp.ne.s32.totalorder %s68, %s82
    %p84 = scmp.eq.s32.totalorder %s16, 0
    %p85 = por %p83, %p84
    %s87 = sadd.s32 %s86, 1
    %p90 = scmp.eq.s32.totalorder %s10, 1
    %p91 = scmp.ne.s32.totalorder %s86, %s88
    %p92 = scmp.eq.s32.totalorder %s10, 0
    %p93 = por %p91, %p92
    %p94 = scmp.ne.s32.totalorder %s86, %s88
    %p95 = scmp.eq.s32.totalorder %s15, 1
    %p96 = por %p94, %p95
    %p97 = scmp.ne.s32.totalorder %s88, %s89
    %p98 = scmp.eq.s32.totalorder %s15, 0
    %p99 = por %p97, %p98
    %p100 = scmp.ne.s32.totalorder %s88, %s89
    %p101 = scmp.eq.s32.totalorder %s16, 1
    %p102 = por %p100, %p101
    %p104 = scmp.ne.s32.totalorder %s89, %s103
    %p105 = scmp.eq.s32.totalorder %s16, 0
    %p106 = por %p104, %p105
    %s107 = ssub.s32 %s10, %s17
    %p108 = scmp.eq.s32.totalorder %s107, 0
    %s110 = sadd.s32 %s109, 1
    %s111 = scalar_select %p108, %s109, %s110
    %p114 = pneg %p108
    %p115 = scmp.eq.s32.totalorder %s10, 1
    %p116 = por %p114, %p115
    %p117 = scmp.ne.s32.totalorder %s109, %s112
    %p118 = scmp.eq.s32.totalorder %s10, 0
    %p119 = por %p117, %p118
    %p120 = scmp.ne.s32.totalorder %s109, %s112
    %p121 = scmp.eq.s32.totalorder %s15, 1
    %p122 = por %p120, %p121
    %p123 = scmp.ne.s32.totalorder %s112, %s113
    %p124 = scmp.eq.s32.totalorder %s15, 0
    %p125 = por %p123, %p124
    %p126 = scmp.ne.s32.totalorder %s112, %s113
    %p127 = scmp.eq.s32.totalorder %s16, 1
    %p128 = por %p126, %p127
    %p130 = scmp.ne.s32.totalorder %s113, %s129
    %p131 = scmp.eq.s32.totalorder %s16, 0
    %p132 = por %p130, %p131
    %p133 = scmp.le.s32.totalorder 1, %s10
    %p134 = scmp.lt.s32.totalorder %s10, 3
    %p135 = pnand %p133, %p134
    %p136 = pneg %p135
    // Predicated region
    $region9: #{_lambda_.1} parent=5 // pred_check
      _
    $region10: #{_lambda_.1} parent=5 // pred_check_branch
      %138 = sbr.rel (%p135) target = $region12
    $region11: #{_lambda_.1} parent=5 // pred_region
      %s139 = ssub.s32 %s10, 1
      // Predicated region
      $region13: #{_lambda_.1} parent=11 // pred_check
        %p140 = pneg %p57
      $region14: #{_lambda_.1} parent=11 // pred_check_branch
        %142 = sbr.rel (%p140) target = $region16
      $region15: #{_lambda_.1} parent=11 // pred_region
        _
      $region16: #{_lambda_.1} parent=11 // pred_fallthru
        _
      // Predicated region
      $region17: #{_lambda_.1} parent=11 // pred_check
        %p143 = pneg %p78
      $region18: #{_lambda_.1} parent=11 // pred_check_branch
        %145 = sbr.rel (%p143) target = $region20
      $region19: #{_lambda_.1} parent=11 // pred_region
        _
      $region20: #{_lambda_.1} parent=11 // pred_fallthru
        _
      // Predicated region
      $region21: #{_lambda_.1} parent=11 // pred_check
        %p146 = pneg %p99
      $region22: #{_lambda_.1} parent=11 // pred_check_branch
        %148 = sbr.rel (%p146) target = $region24
      $region23: #{_lambda_.1} parent=11 // pred_region
        _
      $region24: #{_lambda_.1} parent=11 // pred_fallthru
        _
    $region12: #{_lambda_.1} parent=5 // pred_fallthru
      _
    %p149 = scmp.lt.s32.totalorder %s10, 2
    // Predicated region
    $region25: #{_lambda_.1} parent=5 // pred_check
      %p150 = pneg %p149
    $region26: #{_lambda_.1} parent=5 // pred_check_branch
      %152 = sbr.rel (%p150) target = $region28
    $region27: #{_lambda_.1} parent=5 // pred_region
      // Predicated region
      $region29: #{_lambda_.1} parent=27 // pred_check
        %p153 = pneg %p30
      $region30: #{_lambda_.1} parent=27 // pred_check_branch
        %155 = sbr.rel (%p153) target = $region32
      $region31: #{_lambda_.1} parent=27 // pred_region
        %s156 = smul.u32 2, %s10
        %p157 = scmp.lt.s32.totalorder %s156, 3
        %s158 = scalar_select %p157, %s156, 3
        %s159 = smul.addr %s158, 8
        %s160 = smul.addr %s159, 4
        %s161 = scalar_lea.vmem %s0, %s160
        %s162 = smul.u32 2, %s10
      $region32: #{_lambda_.1} parent=27 // pred_fallthru
        _
    $region28: #{_lambda_.1} parent=5 // pred_fallthru
      _
    %p163 = scmp.le.s32.totalorder 1, %s10
    %p164 = scmp.lt.s32.totalorder %s10, 3
    %p165 = pnand %p163, %p164
    %p166 = pneg %p165
    // Predicated region
    $region33: #{_lambda_.1} parent=5 // pred_check
      _
    $region34: #{_lambda_.1} parent=5 // pred_check_branch
      %168 = sbr.rel (%p165) target = $region36
    $region35: #{_lambda_.1} parent=5 // pred_region
      %s169 = ssub.s32 %s10, 1
      %s170 = smul.u32 2, %s15
      %p171 = scmp.lt.s32.totalorder %s170, 3
      %s172 = scalar_select %p171, %s170, 3
      %s173 = smul.addr %s172, 8
      %s174 = smul.addr %s173, 4
      %s175 = scalar_lea.vmem %s0, %s174
      %p176 = pneg %p36
      %p177 = pneg %p33
      %p178 = pneg %p57
      %p179 = pneg %p54
      %p180 = pneg %p78
      %p181 = pneg %p75
      %p182 = pneg %p99
      %p183 = pneg %p96
      %p184 = pneg %p125
      %p185 = pneg %p122
      %s186 = smul.u32 2, %s15
      %p187 = scmp.lt.s32.totalorder %s186, 3
      %s188 = scalar_select %p187, %s186, 3
      %s189 = smul.addr %s188, 22
      %s190 = smul.addr %s189, 8
      %s191 = scalar_lea.vmem %s4, %s190
      %s192 = smul.u32 2, %s15
      %p193 = scmp.lt.s32.totalorder %s192, 3
      %s194 = scalar_select %p193, %s192, 3
      %s195 = smul.addr %s194, 8
      %s196 = smul.addr %s195, 4
      %s197 = scalar_lea.vmem %s0, %s196
      %s198 = smul.u32 2, %s15
      %s199 = smul.u32 2, %s15
      %p200 = scmp.lt.s32.totalorder %s199, 3
      %s201 = scalar_select %p200, %s199, 3
      %s202 = smul.addr %s201, 22
      %s203 = smul.addr %s202, 8
      %s204 = scalar_lea.vmem %s4, %s203
      %s205 = smul.u32 2, %s15
      %v207 = vld [vmem:[%s1] sm:$0xf]
      %v208 = vld [vmem:[%s1 + $0x4] sm:$0xf]
      %v209 = vld [vmem:[%s1 + $0x8] sm:$0xf]
      %v210 = vld [vmem:[%s1 + $0xc] sm:$0xf]
      %v211 = vld [vmem:[%s1 + $0x10] sm:$0xf]
      %v212 = vld [vmem:[%s1 + $0x14] sm:$0xf]
      %v213 = vld [vmem:[%s1 + $0x18] sm:$0xf]
      %v214 = vld [vmem:[%s1 + $0x1c] sm:$0xf]
      %v215 = vld [vmem:[%s1 + $0x20] sm:$0xf]
      %v216 = vld [vmem:[%s1 + $0x24] sm:$0xf]
      %v217 = vld [vmem:[%s1 + $0x28] sm:$0xf]
      %v218 = vld [vmem:[%s2] sm:$0xff]
      %v219 = vld [vmem:[%s2 + $0x8] sm:$0xff]
      %v220 = vld [vmem:[%s2 + $0x10] sm:$0xff]
      %v221 = vld [vmem:[%s2 + $0x18] sm:$0xff]
      %v222 = vld [vmem:[%s2 + $0x20] sm:$0xff]
      %v223 = vld [vmem:[%s2 + $0x28] sm:$0xff]
      %v224 = vld [vmem:[%s2 + $0x30] sm:$0xff]
      %v225 = vld [vmem:[%s2 + $0x38] sm:$0xff]
      %v226 = vld [vmem:[%s2 + $0x40] sm:$0xff]
      %v227 = vld [vmem:[%s2 + $0x48] sm:$0xff]
      %v228 = vld [vmem:[%s2 + $0x50] sm:$0xff]
      %v229 = vld [vmem:[%s2 + $0x58] sm:$0xff]
      %v230 = vld [vmem:[%s2 + $0x60] sm:$0xff]
      %v231 = vld [vmem:[%s2 + $0x68] sm:$0xff]
      %v232 = vld [vmem:[%s2 + $0x70] sm:$0xff]
      %v233 = vld [vmem:[%s2 + $0x78] sm:$0xff]
      %v234 = vld [vmem:[%s3] sm:$0xff]
      %v235 = vld [vmem:[%s3 + $0x8] sm:$0xff]
      %v236 = vld [vmem:[%s3 + $0x10] sm:$0xff]
      %v237 = vld [vmem:[%s3 + $0x18] sm:$0xff]
      %v238 = vld [vmem:[%s3 + $0x20] sm:$0xff]
      %v239 = vld [vmem:[%s3 + $0x28] sm:$0xff]
      %v240 = vld [vmem:[%s3 + $0x30] sm:$0xff]
      %v241 = vld [vmem:[%s3 + $0x38] sm:$0xff]
      %v242 = vld [vmem:[%s3 + $0x40] sm:$0xff]
      %v243 = vld [vmem:[%s3 + $0x48] sm:$0xff]
      %v244 = vld [vmem:[%s3 + $0x50] sm:$0xff]
      %v245 = vld [vmem:[%s3 + $0x58] sm:$0xff]
      %v246 = vld [vmem:[%s3 + $0x60] sm:$0xff]
      %v247 = vld [vmem:[%s3 + $0x68] sm:$0xff]
      %v248 = vld [vmem:[%s3 + $0x70] sm:$0xff]
      %v249 = vld [vmem:[%s3 + $0x78] sm:$0xff]
      %v250 = vld [vmem:[%s3 + $0x80] sm:$0xff]
      %v251 = vld [vmem:[%s3 + $0x88] sm:$0xff]
      %v252 = vld [vmem:[%s3 + $0x90] sm:$0xff]
      %v253 = vld [vmem:[%s3 + $0x98] sm:$0xff]
      %v254 = vld [vmem:[%s3 + $0xa0] sm:$0xff]
      %v255 = vld [vmem:[%s3 + $0xa8] sm:$0xff]
      %v256 = vld [vmem:[%s197] sm:$0xf]
      %v257 = vld [vmem:[%s197 + $0x4] sm:$0xf]
      %v258 = vld [vmem:[%s197 + $0x8] sm:$0xf]
      %v259 = vld [vmem:[%s197 + $0xc] sm:$0xf]
      %v260 = vld [vmem:[%s197 + $0x10] sm:$0xf]
      %v261 = vld [vmem:[%s197 + $0x14] sm:$0xf]
      %v262 = vld [vmem:[%s197 + $0x18] sm:$0xf]
      %v263 = vld [vmem:[%s197 + $0x1c] sm:$0xf]
      %v275 = vunpack.c.l.b16 %v207
      %v276 = vunpack.c.l.b16 %v208
      %v277 = vunpack.c.l.b16 %v209
      %v278 = vunpack.c.l.b16 %v210
      %v279 = vunpack.c.l.b16 %v211
      %v280 = vunpack.c.l.b16 %v212
      %v281 = vunpack.c.l.b16 %v213
      %v282 = vunpack.c.l.b16 %v214
      %v283 = vunpack.c.l.b16 %v215
      %v284 = vunpack.c.l.b16 %v216
      %v285 = vunpack.c.l.b16 %v217
      %v286 = vpack.c.b16 %v276, %v275
      %v287 = vpack.c.b16 %v278, %v277
      %v288 = vpack.c.b16 %v280, %v279
      %v289 = vpack.c.b16 %v282, %v281
      %v290 = vpack.c.b16 %v284, %v283
      %v291 = vpack.c.b16 %v285, %v285
      %v300 = vunpack.c.l.b16 %v256
      %v301 = vunpack.c.l.b16 %v257
      %v302 = vunpack.c.l.b16 %v258
      %v303 = vunpack.c.l.b16 %v259
      %v304 = vunpack.c.l.b16 %v260
      %v305 = vunpack.c.l.b16 %v261
      %v306 = vunpack.c.l.b16 %v262
      %v307 = vunpack.c.l.b16 %v263
      %v308 = vpack.c.b16 %v301, %v300
      %v309 = vpack.c.b16 %v303, %v302
      %v310 = vpack.c.b16 %v305, %v304
      %v311 = vpack.c.b16 %v307, %v306
      %vm316 = vcmask 523264
      %v318 = vsel %vm316, %v286, 0
      %v321 = vsel %vm316, %v287, 0
      %v324 = vsel %vm316, %v288, 0
      %v327 = vsel %vm316, %v289, 0
      %v330 = vsel %vm316, %v290, 0
      %v333 = vsel %vm316, %v291, 0
      %335 = vmatprep.subr.bf16.mxu0 0
      %336 = vmatpush1.bf16.msra.mxu0 %v308
      %337 = vmatprep.subr.bf16.mxu0 0
      %338 = vmatpush1.bf16.msra.mxu0 %v309
      %339 = vmatprep.subr.bf16.mxu0 0
      %340 = vmatpush1.bf16.msra.mxu0 %v310
      %341 = vmatprep.subr.bf16.mxu0 0
      %342 = vmatpush1.bf16.msra.mxu0 %v311
      %343 = vmatprep.subr.bf16.mxu0 0
      %344 = vmatpush1.bf16.msra.mxu0 0
      %345 = vmatprep.subr.bf16.mxu0 0
      %346 = vmatpush1.bf16.msra.mxu0 0
      %347 = vmatprep.subr.bf16.mxu0 0
      %348 = vmatpush1.bf16.msra.mxu0 0
      %349 = vmatprep.subr.bf16.mxu0 0
      %350 = vmatpush1.bf16.msra.mxu0 0
      %351 = vmatprep.subr.bf16.mxu0 0
      %352 = vmatpush1.bf16.msra.mxu0 0
      %353 = vmatprep.subr.bf16.mxu0 0
      %354 = vmatpush1.bf16.msra.mxu0 0
      %355 = vmatprep.subr.bf16.mxu0 0
      %356 = vmatpush1.bf16.msra.mxu0 0
      %357 = vmatprep.subr.bf16.mxu0 0
      %358 = vmatpush1.bf16.msra.mxu0 0
      %359 = vmatprep.subr.bf16.mxu0 0
      %360 = vmatpush1.bf16.msra.mxu0 0
      %361 = vmatprep.subr.bf16.mxu0 0
      %362 = vmatpush1.bf16.msra.mxu0 0
      %363 = vmatprep.subr.bf16.mxu0 0
      %364 = vmatpush1.bf16.msra.mxu0 0
      %365 = vmatprep.subr.bf16.mxu0 0
      %366 = vmatpush1.bf16.msra.mxu0 0
      %367 = vmatprep.mubr.bf16.mxu0 0
      %368 = vmatmul.mubr.bf16.gmra.mrb[0].mxu0 %v318
      %v369 = vpop.f32.mrb[0].mxu0
      %v370 = vadd.f32 0.0, %v369
      %v371 = vpop.f32.mrb[0].mxu0
      %v372 = vpop.f32.mrb[0].mxu0
      %v373 = vadd.f32 0.0, %v372
      %v374 = vpop.f32.mrb[0].mxu0
      %375 = vmatprep.mubr.bf16.mxu0 0
      %376 = vmatmul.mubr.bf16.gmra.mrb[0].mxu0 %v321
      %v377 = vpop.f32.mrb[0].mxu0
      %v378 = vadd.f32 0.0, %v377
      %v379 = vpop.f32.mrb[0].mxu0
      %v380 = vpop.f32.mrb[0].mxu0
      %v381 = vadd.f32 0.0, %v380
      %v382 = vpop.f32.mrb[0].mxu0
      %383 = vmatprep.mubr.bf16.mxu0 0
      %384 = vmatmul.mubr.bf16.gmra.mrb[0].mxu0 %v324
      %v385 = vpop.f32.mrb[0].mxu0
      %v386 = vadd.f32 0.0, %v385
      %v387 = vpop.f32.mrb[0].mxu0
      %v388 = vpop.f32.mrb[0].mxu0
      %v389 = vadd.f32 0.0, %v388
      %v390 = vpop.f32.mrb[0].mxu0
      %391 = vmatprep.mubr.bf16.mxu0 0
      %392 = vmatmul.mubr.bf16.gmra.mrb[0].mxu0 %v327
      %v393 = vpop.f32.mrb[0].mxu0
      %v394 = vadd.f32 0.0, %v393
      %v395 = vpop.f32.mrb[0].mxu0
      %v396 = vpop.f32.mrb[0].mxu0
      %v397 = vadd.f32 0.0, %v396
      %v398 = vpop.f32.mrb[0].mxu0
      %399 = vmatprep.mubr.bf16.mxu0 0
      %400 = vmatmul.mubr.bf16.gmra.mrb[0].mxu0 %v330
      %v401 = vpop.f32.mrb[0].mxu0
      %v402 = vadd.f32 0.0, %v401
      %v403 = vpop.f32.mrb[0].mxu0
      %v404 = vpop.f32.mrb[0].mxu0
      %v405 = vadd.f32 0.0, %v404
      %v406 = vpop.f32.mrb[0].mxu0
      %407 = vmatprep.mubr.bf16.mxu0 0
      %408 = vmatmul.mubr.bf16.gmra.mrb[0].mxu0 %v333
      %v409 = vpop.f32.mrb[0].mxu0
      %v410 = vadd.f32 0.0, %v409
      %v411 = vpop.f32.mrb[0].mxu0
      %v412 = vpop.f32.mrb[0].mxu0
      %v413 = vpop.f32.mrb[0].mxu0
      %414 = vdwg.mxu0
      %s415 = scalar_lea.vmem %s197, 32
      %v416 = vld [vmem:[%s415] sm:$0xf]
      %v417 = vld [vmem:[%s415 + $0x4] sm:$0xf]
      %v418 = vld [vmem:[%s415 + $0x8] sm:$0xf]
      %v419 = vld [vmem:[%s415 + $0xc] sm:$0xf]
      %v420 = vld [vmem:[%s415 + $0x10] sm:$0xf]
      %v421 = vld [vmem:[%s415 + $0x14] sm:$0xf]
      %v422 = vld [vmem:[%s415 + $0x18] sm:$0xf]
      %v423 = vld [vmem:[%s415 + $0x1c] sm:$0xf]
      %v432 = vunpack.c.l.b16 %v416
      %v433 = vunpack.c.l.b16 %v417
      %v434 = vunpack.c.l.b16 %v418
      %v435 = vunpack.c.l.b16 %v419
      %v436 = vunpack.c.l.b16 %v420
      %v437 = vunpack.c.l.b16 %v421
      %v438 = vunpack.c.l.b16 %v422
      %v439 = vunpack.c.l.b16 %v423
      %v440 = vpack.c.b16 %v433, %v432
      %v441 = vpack.c.b16 %v435, %v434
      %v442 = vpack.c.b16 %v437, %v436
      %v443 = vpack.c.b16 %v439, %v438
      %448 = vmatprep.subr.bf16.mxu0 0
      %449 = vmatpush1.bf16.msra.mxu0 %v440
      %450 = vmatprep.subr.bf16.mxu0 0
      %451 = vmatpush1.bf16.msra.mxu0 %v441
      %452 = vmatprep.subr.bf16.mxu0 0
      %453 = vmatpush1.bf16.msra.mxu0 %v442
      %454 = vmatprep.subr.bf16.mxu0 0
      %455 = vmatpush1.bf16.msra.mxu0 %v443
      %456 = vmatprep.subr.bf16.mxu0 0
      %457 = vmatpush1.bf16.msra.mxu0 0
      %458 = vmatprep.subr.bf16.mxu0 0
      %459 = vmatpush1.bf16.msra.mxu0 0
      %460 = vmatprep.subr.bf16.mxu0 0
      %461 = vmatpush1.bf16.msra.mxu0 0
      %462 = vmatprep.subr.bf16.mxu0 0
      %463 = vmatpush1.bf16.msra.mxu0 0
      %464 = vmatprep.subr.bf16.mxu0 0
      %465 = vmatpush1.bf16.msra.mxu0 0
      %466 = vmatprep.subr.bf16.mxu0 0
      %467 = vmatpush1.bf16.msra.mxu0 0
      %468 = vmatprep.subr.bf16.mxu0 0
      %469 = vmatpush1.bf16.msra.mxu0 0
      %470 = vmatprep.subr.bf16.mxu0 0
      %471 = vmatpush1.bf16.msra.mxu0 0
      %472 = vmatprep.subr.bf16.mxu0 0
      %473 = vmatpush1.bf16.msra.mxu0 0
      %474 = vmatprep.subr.bf16.mxu0 0
      %475 = vmatpush1.bf16.msra.mxu0 0
      %476 = vmatprep.subr.bf16.mxu0 0
      %477 = vmatpush1.bf16.msra.mxu0 0
      %478 = vmatprep.subr.bf16.mxu0 0
      %479 = vmatpush1.bf16.msra.mxu0 0
      %480 = vmatprep.mubr.bf16.mxu0 0
      %481 = vmatmul.mubr.bf16.gmra.mrb[0].mxu0 %v318
      %v482 = vpop.f32.mrb[0].mxu0
      %v483 = vadd.f32 0.0, %v482
      %v484 = vpop.f32.mrb[0].mxu0
      %v485 = vpop.f32.mrb[0].mxu0
      %v486 = vadd.f32 0.0, %v485
      %v487 = vpop.f32.mrb[0].mxu0
      %488 = vmatprep.mubr.bf16.mxu0 0
      %489 = vmatmul.mubr.bf16.gmra.mrb[0].mxu0 %v321
      %v490 = vpop.f32.mrb[0].mxu0
      %v491 = vadd.f32 0.0, %v490
      %v492 = vpop.f32.mrb[0].mxu0
      %v493 = vpop.f32.mrb[0].mxu0
      %v494 = vadd.f32 0.0, %v493
      %v495 = vpop.f32.mrb[0].mxu0
      %496 = vmatprep.mubr.bf16.mxu0 0
      %497 = vmatmul.mubr.bf16.gmra.mrb[0].mxu0 %v324
      %v498 = vpop.f32.mrb[0].mxu0
      %v499 = vadd.f32 0.0, %v498
      %v500 = vpop.f32.mrb[0].mxu0
      %v501 = vpop.f32.mrb[0].mxu0
      %v502 = vadd.f32 0.0, %v501
      %v503 = vpop.f32.mrb[0].mxu0
      %504 = vmatprep.mubr.bf16.mxu0 0
      %505 = vmatmul.mubr.bf16.gmra.mrb[0].mxu0 %v327
      %v506 = vpop.f32.mrb[0].mxu0
      %v507 = vadd.f32 0.0, %v506
      %v508 = vpop.f32.mrb[0].mxu0
      %v509 = vpop.f32.mrb[0].mxu0
      %v510 = vadd.f32 0.0, %v509
      %v511 = vpop.f32.mrb[0].mxu0
      %512 = vmatprep.mubr.bf16.mxu0 0
      %513 = vmatmul.mubr.bf16.gmra.mrb[0].mxu0 %v330
      %v514 = vpop.f32.mrb[0].mxu0
      %v515 = vadd.f32 0.0, %v514
      %v516 = vpop.f32.mrb[0].mxu0
      %v517 = vpop.f32.mrb[0].mxu0
      %v518 = vadd.f32 0.0, %v517
      %v519 = vpop.f32.mrb[0].mxu0
      %520 = vmatprep.mubr.bf16.mxu0 0
      %521 = vmatmul.mubr.bf16.gmra.mrb[0].mxu0 %v333
      %v522 = vpop.f32.mrb[0].mxu0
      %v523 = vadd.f32 0.0, %v522
      %v524 = vpop.f32.mrb[0].mxu0
      %v525 = vpop.f32.mrb[0].mxu0
      %v526 = vpop.f32.mrb[0].mxu0
      %527 = vdwg.mxu0
      %v528 = vpack.c.bf16 %v373, %v370
      %v529 = vpack.c.bf16 %v381, %v378
      %v530 = vpack.c.bf16 %v389, %v386
      %v531 = vpack.c.bf16 %v397, %v394
      %v532 = vpack.c.bf16 %v405, %v402
      %v533 = vpack.c.bf16 %v483, %v410
      %v534 = vpack.c.bf16 %v491, %v486
      %v535 = vpack.c.bf16 %v499, %v494
      %v536 = vpack.c.bf16 %v507, %v502
      %v537 = vpack.c.bf16 %v515, %v510
      %v538 = vpack.c.bf16 %v523, %v518
      %v555 = vunpack.c.l.b16 %v218
      %v556 = vunpack.c.h.b16 %v218
      %v557 = vunpack.c.l.b16 %v219
      %v558 = vunpack.c.h.b16 %v219
      %v559 = vunpack.c.l.b16 %v220
      %v560 = vunpack.c.h.b16 %v220
      %v561 = vunpack.c.l.b16 %v221
      %v562 = vunpack.c.h.b16 %v221
      %v563 = vunpack.c.l.b16 %v222
      %v564 = vunpack.c.h.b16 %v222
      %v565 = vunpack.c.l.b16 %v223
      %v566 = vunpack.c.h.b16 %v223
      %v567 = vunpack.c.l.b16 %v224
      %v568 = vunpack.c.h.b16 %v224
      %v569 = vunpack.c.l.b16 %v225
      %v570 = vunpack.c.h.b16 %v225
      %v571 = vunpack.c.l.b16 %v226
      %v572 = vunpack.c.h.b16 %v226
      %v573 = vunpack.c.l.b16 %v227
      %v574 = vunpack.c.h.b16 %v227
      %v575 = vunpack.c.l.b16 %v228
      %v576 = vunpack.c.h.b16 %v228
      %v577 = vunpack.c.l.b16 %v229
      %v578 = vunpack.c.h.b16 %v229
      %v579 = vunpack.c.l.b16 %v230
      %v580 = vunpack.c.h.b16 %v230
      %v581 = vunpack.c.l.b16 %v231
      %v582 = vunpack.c.h.b16 %v231
      %v583 = vunpack.c.l.b16 %v232
      %v584 = vunpack.c.h.b16 %v232
      %v585 = vunpack.c.l.b16 %v233
      %v586 = vunpack.c.h.b16 %v233
      %v587 = vpack.c.b16 %v557, %v555
      %v588 = vpack.c.b16 %v558, %v556
      %v589 = vpack.c.b16 %v561, %v559
      %v590 = vpack.c.b16 %v562, %v560
      %v591 = vpack.c.b16 %v565, %v563
      %v592 = vpack.c.b16 %v566, %v564
      %v593 = vpack.c.b16 %v569, %v567
      %v594 = vpack.c.b16 %v570, %v568
      %v595 = vpack.c.b16 %v573, %v571
      %v596 = vpack.c.b16 %v574, %v572
      %v597 = vpack.c.b16 %v577, %v575
      %v598 = vpack.c.b16 %v578, %v576
      %v599 = vpack.c.b16 %v581, %v579
      %v600 = vpack.c.b16 %v582, %v580
      %v601 = vpack.c.b16 %v585, %v583
      %v602 = vpack.c.b16 %v586, %v584
      %619 = vmatprep.subr.bf16.mxu0 %v588
      %620 = vmatpush1.bf16.msra.mxu0 %v587
      %621 = vmatprep.subr.bf16.mxu0 %v590
      %622 = vmatpush1.bf16.msra.mxu0 %v589
      %623 = vmatprep.subr.bf16.mxu0 %v592
      %624 = vmatpush1.bf16.msra.mxu0 %v591
      %625 = vmatprep.subr.bf16.mxu0 %v594
      %626 = vmatpush1.bf16.msra.mxu0 %v593
      %627 = vmatprep.subr.bf16.mxu0 %v596
      %628 = vmatpush1.bf16.msra.mxu0 %v595
      %629 = vmatprep.subr.bf16.mxu0 %v598
      %630 = vmatpush1.bf16.msra.mxu0 %v597
      %631 = vmatprep.subr.bf16.mxu0 %v600
      %632 = vmatpush1.bf16.msra.mxu0 %v599
      %633 = vmatprep.subr.bf16.mxu0 %v602
      %634 = vmatpush1.bf16.msra.mxu0 %v601
      %635 = vmatprep.subr.bf16.mxu0 0
      %636 = vmatpush1.bf16.msra.mxu0 0
      %637 = vmatprep.subr.bf16.mxu0 0
      %638 = vmatpush1.bf16.msra.mxu0 0
      %639 = vmatprep.subr.bf16.mxu0 0
      %640 = vmatpush1.bf16.msra.mxu0 0
      %641 = vmatprep.subr.bf16.mxu0 0
      %642 = vmatpush1.bf16.msra.mxu0 0
      %643 = vmatprep.subr.bf16.mxu0 0
      %644 = vmatpush1.bf16.msra.mxu0 0
      %645 = vmatprep.subr.bf16.mxu0 0
      %646 = vmatpush1.bf16.msra.mxu0 0
      %647 = vmatprep.subr.bf16.mxu0 0
      %648 = vmatpush1.bf16.msra.mxu0 0
      %649 = vmatprep.subr.bf16.mxu0 0
      %650 = vmatpush1.bf16.msra.mxu0 0
      %651 = vmatprep.mubr.bf16.mxu0 0
      %652 = vmatmul.mubr.bf16.gmra.mrb[0].mxu0 %v528
      %v653 = vpop.f32.mrb[0].mxu0
      %v654 = vadd.f32 0.0, %v653
      %v655 = vpop.f32.mrb[0].mxu0
      %v656 = vadd.f32 0.0, %v655
      %v657 = vpop.f32.mrb[0].mxu0
      %v658 = vadd.f32 0.0, %v657
      %v659 = vpop.f32.mrb[0].mxu0
      %v660 = vadd.f32 0.0, %v659
      %661 = vmatprep.mubr.bf16.mxu0 0
      %662 = vmatmul.mubr.bf16.gmra.mrb[0].mxu0 %v529
      %v663 = vpop.f32.mrb[0].mxu0
      %v664 = vadd.f32 0.0, %v663
      %v665 = vpop.f32.mrb[0].mxu0
      %v666 = vadd.f32 0.0, %v665
      %v667 = vpop.f32.mrb[0].mxu0
      %v668 = vadd.f32 0.0, %v667
      %v669 = vpop.f32.mrb[0].mxu0
      %v670 = vadd.f32 0.0, %v669
      %671 = vmatprep.mubr.bf16.mxu0 0
      %672 = vmatmul.mubr.bf16.gmra.mrb[0].mxu0 %v530
      %v673 = vpop.f32.mrb[0].mxu0
      %v674 = vadd.f32 0.0, %v673
      %v675 = vpop.f32.mrb[0].mxu0
      %v676 = vadd.f32 0.0, %v675
      %v677 = vpop.f32.mrb[0].mxu0
      %v678 = vadd.f32 0.0, %v677
      %v679 = vpop.f32.mrb[0].mxu0
      %v680 = vadd.f32 0.0, %v679
      %681 = vmatprep.mubr.bf16.mxu0 0
      %682 = vmatmul.mubr.bf16.gmra.mrb[0].mxu0 %v531
      %v683 = vpop.f32.mrb[0].mxu0
      %v684 = vadd.f32 0.0, %v683
      %v685 = vpop.f32.mrb[0].mxu0
      %v686 = vadd.f32 0.0, %v685
      %v687 = vpop.f32.mrb[0].mxu0
      %v688 = vadd.f32 0.0, %v687
      %v689 = vpop.f32.mrb[0].mxu0
      %v690 = vadd.f32 0.0, %v689
      %691 = vmatprep.mubr.bf16.mxu0 0
      %692 = vmatmul.mubr.bf16.gmra.mrb[0].mxu0 %v532
      %v693 = vpop.f32.mrb[0].mxu0
      %v694 = vadd.f32 0.0, %v693
      %v695 = vpop.f32.mrb[0].mxu0
      %v696 = vadd.f32 0.0, %v695
      %v697 = vpop.f32.mrb[0].mxu0
      %v698 = vadd.f32 0.0, %v697
      %v699 = vpop.f32.mrb[0].mxu0
      %v700 = vadd.f32 0.0, %v699
      %701 = vmatprep.mubr.bf16.mxu0 0
      %702 = vmatmul.mubr.bf16.gmra.mrb[0].mxu0 %v533
      %v703 = vpop.f32.mrb[0].mxu0
      %v704 = vadd.f32 0.0, %v703
      %v705 = vpop.f32.mrb[0].mxu0
      %v706 = vadd.f32 0.0, %v705
      %v707 = vpop.f32.mrb[0].mxu0
      %v708 = vadd.f32 0.0, %v707
      %v709 = vpop.f32.mrb[0].mxu0
      %v710 = vadd.f32 0.0, %v709
      %711 = vmatprep.mubr.bf16.mxu0 0
      %712 = vmatmul.mubr.bf16.gmra.mrb[0].mxu0 %v534
      %v713 = vpop.f32.mrb[0].mxu0
      %v714 = vadd.f32 0.0, %v713
      %v715 = vpop.f32.mrb[0].mxu0
      %v716 = vadd.f32 0.0, %v715
      %v717 = vpop.f32.mrb[0].mxu0
      %v718 = vadd.f32 0.0, %v717
      %v719 = vpop.f32.mrb[0].mxu0
      %v720 = vadd.f32 0.0, %v719
      %721 = vmatprep.mubr.bf16.mxu0 0
      %722 = vmatmul.mubr.bf16.gmra.mrb[0].mxu0 %v535
      %v723 = vpop.f32.mrb[0].mxu0
      %v724 = vadd.f32 0.0, %v723
      %v725 = vpop.f32.mrb[0].mxu0
      %v726 = vadd.f32 0.0, %v725
      %v727 = vpop.f32.mrb[0].mxu0
      %v728 = vadd.f32 0.0, %v727
      %v729 = vpop.f32.mrb[0].mxu0
      %v730 = vadd.f32 0.0, %v729
      %731 = vmatprep.mubr.bf16.mxu0 0
      %732 = vmatmul.mubr.bf16.gmra.mrb[0].mxu0 %v536
      %v733 = vpop.f32.mrb[0].mxu0
      %v734 = vadd.f32 0.0, %v733
      %v735 = vpop.f32.mrb[0].mxu0
      %v736 = vadd.f32 0.0, %v735
      %v737 = vpop.f32.mrb[0].mxu0
      %v738 = vadd.f32 0.0, %v737
      %v739 = vpop.f32.mrb[0].mxu0
      %v740 = vadd.f32 0.0, %v739
      %741 = vmatprep.mubr.bf16.mxu0 0
      %742 = vmatmul.mubr.bf16.gmra.mrb[0].mxu0 %v537
      %v743 = vpop.f32.mrb[0].mxu0
      %v744 = vadd.f32 0.0, %v743
      %v745 = vpop.f32.mrb[0].mxu0
      %v746 = vadd.f32 0.0, %v745
      %v747 = vpop.f32.mrb[0].mxu0
      %v748 = vadd.f32 0.0, %v747
      %v749 = vpop.f32.mrb[0].mxu0
      %v750 = vadd.f32 0.0, %v749
      %751 = vmatprep.mubr.bf16.mxu0 0
      %752 = vmatmul.mubr.bf16.gmra.mrb[0].mxu0 %v538
      %v753 = vpop.f32.mrb[0].mxu0
      %v754 = vadd.f32 0.0, %v753
      %v755 = vpop.f32.mrb[0].mxu0
      %v756 = vadd.f32 0.0, %v755
      %v757 = vpop.f32.mrb[0].mxu0
      %v758 = vadd.f32 0.0, %v757
      %v759 = vpop.f32.mrb[0].mxu0
      %v760 = vadd.f32 0.0, %v759
      %761 = vdwg.mxu0
      %v762 = vadd.f32 %v654, %v234
      %v763 = vadd.f32 %v656, %v235
      %v764 = vadd.f32 %v658, %v236
      %v765 = vadd.f32 %v660, %v237
      %v766 = vadd.f32 %v664, %v238
      %v767 = vadd.f32 %v666, %v239
      %v768 = vadd.f32 %v668, %v240
      %v769 = vadd.f32 %v670, %v241
      %v770 = vadd.f32 %v674, %v242
      %v771 = vadd.f32 %v676, %v243
      %v772 = vadd.f32 %v678, %v244
      %v773 = vadd.f32 %v680, %v245
      %v774 = vadd.f32 %v684, %v246
      %v775 = vadd.f32 %v686, %v247
      %v776 = vadd.f32 %v688, %v248
      %v777 = vadd.f32 %v690, %v249
      %v778 = vadd.f32 %v694, %v250
      %v779 = vadd.f32 %v696, %v251
      %v780 = vadd.f32 %v698, %v252
      %v781 = vadd.f32 %v700, %v253
      %v782 = vadd.f32 %v704, %v254
      %v783 = vadd.f32 %v706, %v255
      %784 = vst [vmem:[%s204] sm:$0xff] %v762
      %785 = vst [vmem:[%s204 + $0x8] sm:$0xff] %v763
      %786 = vst [vmem:[%s204 + $0x10] sm:$0xff] %v764
      %787 = vst [vmem:[%s204 + $0x18] sm:$0xff] %v765
      %788 = vst [vmem:[%s204 + $0x20] sm:$0xff] %v766
      %789 = vst [vmem:[%s204 + $0x28] sm:$0xff] %v767
      %790 = vst [vmem:[%s204 + $0x30] sm:$0xff] %v768
      %791 = vst [vmem:[%s204 + $0x38] sm:$0xff] %v769
      %792 = vst [vmem:[%s204 + $0x40] sm:$0xff] %v770
      %793 = vst [vmem:[%s204 + $0x48] sm:$0xff] %v771
      %794 = vst [vmem:[%s204 + $0x50] sm:$0xff] %v772
      %795 = vst [vmem:[%s204 + $0x58] sm:$0xff] %v773
      %796 = vst [vmem:[%s204 + $0x60] sm:$0xff] %v774
      %797 = vst [vmem:[%s204 + $0x68] sm:$0xff] %v775
      %798 = vst [vmem:[%s204 + $0x70] sm:$0xff] %v776
      %799 = vst [vmem:[%s204 + $0x78] sm:$0xff] %v777
      %800 = vst [vmem:[%s204 + $0x80] sm:$0xff] %v778
      %801 = vst [vmem:[%s204 + $0x88] sm:$0xff] %v779
      %802 = vst [vmem:[%s204 + $0x90] sm:$0xff] %v780
      %803 = vst [vmem:[%s204 + $0x98] sm:$0xff] %v781
      %804 = vst [vmem:[%s204 + $0xa0] sm:$0xff] %v782
      %805 = vst [vmem:[%s204 + $0xa8] sm:$0xff] %v783
      %v806 = vadd.f32 %v708, %v234
      %v807 = vadd.f32 %v710, %v235
      %v808 = vadd.f32 %v714, %v236
      %v809 = vadd.f32 %v716, %v237
      %v810 = vadd.f32 %v718, %v238
      %v811 = vadd.f32 %v720, %v239
      %v812 = vadd.f32 %v724, %v240
      %v813 = vadd.f32 %v726, %v241
      %v814 = vadd.f32 %v728, %v242
      %v815 = vadd.f32 %v730, %v243
      %v816 = vadd.f32 %v734, %v244
      %v817 = vadd.f32 %v736, %v245
      %v818 = vadd.f32 %v738, %v246
      %v819 = vadd.f32 %v740, %v247
      %v820 = vadd.f32 %v744, %v248
      %v821 = vadd.f32 %v746, %v249
      %v822 = vadd.f32 %v748, %v250
      %v823 = vadd.f32 %v750, %v251
      %v824 = vadd.f32 %v754, %v252
      %v825 = vadd.f32 %v756, %v253
      %v826 = vadd.f32 %v758, %v254
      %v827 = vadd.f32 %v760, %v255
      %s828 = scalar_lea.vmem %s204, 176
      %829 = vst [vmem:[%s828] sm:$0xff] %v806
      %830 = vst [vmem:[%s828 + $0x8] sm:$0xff] %v807
      %831 = vst [vmem:[%s828 + $0x10] sm:$0xff] %v808
      %832 = vst [vmem:[%s828 + $0x18] sm:$0xff] %v809
      %833 = vst [vmem:[%s828 + $0x20] sm:$0xff] %v810
      %834 = vst [vmem:[%s828 + $0x28] sm:$0xff] %v811
      %835 = vst [vmem:[%s828 + $0x30] sm:$0xff] %v812
      %836 = vst [vmem:[%s828 + $0x38] sm:$0xff] %v813
      %837 = vst [vmem:[%s828 + $0x40] sm:$0xff] %v814
      %838 = vst [vmem:[%s828 + $0x48] sm:$0xff] %v815
      %839 = vst [vmem:[%s828 + $0x50] sm:$0xff] %v816
      %840 = vst [vmem:[%s828 + $0x58] sm:$0xff] %v817
      %841 = vst [vmem:[%s828 + $0x60] sm:$0xff] %v818
      %842 = vst [vmem:[%s828 + $0x68] sm:$0xff] %v819
      %843 = vst [vmem:[%s828 + $0x70] sm:$0xff] %v820
      %844 = vst [vmem:[%s828 + $0x78] sm:$0xff] %v821
      %845 = vst [vmem:[%s828 + $0x80] sm:$0xff] %v822
      %846 = vst [vmem:[%s828 + $0x88] sm:$0xff] %v823
      %847 = vst [vmem:[%s828 + $0x90] sm:$0xff] %v824
      %848 = vst [vmem:[%s828 + $0x98] sm:$0xff] %v825
      %849 = vst [vmem:[%s828 + $0xa0] sm:$0xff] %v826
      %850 = vst [vmem:[%s828 + $0xa8] sm:$0xff] %v827
      %s851 = smul.u32 2, %s15
      %p852 = scmp.lt.s32.totalorder %s851, 3
      %s853 = scalar_select %p852, %s851, 3
      %s854 = smul.addr %s853, 22
      %s855 = smul.addr %s854, 8
      %s856 = scalar_lea.vmem %s4, %s855
      // Predicated region
      $region37: #{_lambda_.1} parent=35 // pred_check
        %p857 = pneg %p122
      $region38: #{_lambda_.1} parent=35 // pred_check_branch
        %859 = sbr.rel (%p857) target = $region40
      $region39: #{_lambda_.1} parent=35 // pred_region
        %s860 = smul.u32 2, %s15
      $region40: #{_lambda_.1} parent=35 // pred_fallthru
        _
    $region36: #{_lambda_.1} parent=5 // pred_fallthru
      _
    %p861 = scmp.le.s32.totalorder 2, %s10
    // Predicated region
    $region41: #{_lambda_.1} parent=5 // pred_check
      %p862 = pneg %p861
    $region42: #{_lambda_.1} parent=5 // pred_check_branch
      %864 = sbr.rel (%p862) target = $region44
    $region43: #{_lambda_.1} parent=5 // pred_region
      %s865 = ssub.s32 %s10, 2
      // Predicated region
      $region45: #{_lambda_.1} parent=43 // pred_check
        %p866 = pneg %p128
      $region46: #{_lambda_.1} parent=43 // pred_check_branch
        %868 = sbr.rel (%p866) target = $region48
      $region47: #{_lambda_.1} parent=43 // pred_region
        %s869 = smul.u32 2, %s16
        %p870 = scmp.lt.s32.totalorder %s869, 3
        %s871 = scalar_select %p870, %s869, 3
        %s872 = smul.addr %s871, 22
        %s873 = smul.addr %s872, 8
        %s874 = scalar_lea.vmem %s4, %s873
      $region48: #{_lambda_.1} parent=43 // pred_fallthru
        _
    $region44: #{_lambda_.1} parent=5 // pred_fallthru
      _
  $region6: #{_lambda_.1} parent=0 // loop_footer
    %s14 = sadd.s32 1, %s10
  $region7: #{_lambda_.1} parent=0 // loop_footer_branch
    %9 = sbr.rel target = $region3
  $region8: #{_lambda_.1} parent=0 // loop_exit
    _

</llo_original>
